<compile_context>
chip_gen: v5e
topology: v5e:2x2
jax: 0.10.0
libtpu: 0.0.40
codegen_flags: <defaults>
</compile_context>

<pallas_src>
import math

import jax
import jax.numpy as jnp
from jax.experimental import pallas as pl
from jax.experimental.pallas import tpu as pltpu


_ROWS_PER_TILE = 256   # LHS rows per MXU pass on the batched/tiled path.
                       # 256 amortizes the weight push+drain on v6e/v7x's
                       # 256x256 MXU; also fine (two passes) on v5e's 4x128^2.


def _round_up(x, m):
    return (x + m - 1) // m * m


def _linear_kernel(x_ref, w_ref, b_ref, o_ref):
    """o = x @ W_t + b. Dot runs in the weight dtype, accumulates in f32."""
    w = w_ref[...]
    x = x_ref[...].astype(w.dtype)          # no-op when dtypes already match
    acc = jnp.dot(x, w, preferred_element_type=jnp.float32)
    o_ref[...] = (acc + b_ref[...].astype(jnp.float32)).astype(o_ref.dtype)


def prepare_params(weight, bias, param_dtype=None):
    """One-time parameter prep (hoisted out of every forward call).

    weight: (OUT, IN) torch nn.Linear layout;  bias: (OUT,).
    Returns (w_t, b2d): W pre-transposed to (IN, OUT), bias as (1, OUT) f32.
    No explicit zero-padding: whole-array / full-extent block dims make the
    wrapper pad + output slice unnecessary, so the per-call path has zero
    extra HLO ops outside the custom call.
    param_dtype: optionally downcast W (e.g. jnp.bfloat16 — native MXU dtype
    on v6e/v7x and half the weight DMA).  Accumulation stays f32 in-kernel.
    """
    if param_dtype is None:
        param_dtype = weight.dtype
    w_t = jnp.asarray(weight.T, dtype=param_dtype)
    b2d = jnp.asarray(bias, dtype=jnp.float32).reshape(1, -1)
    return w_t, b2d


@jax.jit
def rnn_forward(prev_hidden, w_t, b2d):
    """forward(prev_hidden) = Linear(hidden+input -> hidden)(prev_hidden).

    B <= 256: gridless whole-array kernel (x, W, b all VMEM-resident, Mosaic
    masks the partial vregs — no wrapper pad/slice).
    B  > 256: batch axis becomes a "parallel" grid axis; W/bias BlockSpecs
    return a constant block so the weight is DMA'd once and stays resident in
    VMEM while 256-row activation tiles stream through the MXU (and the grid
    shards across both TensorCores on v7x).
    """
    B, IN = prev_hidden.shape
    IN_w, OUT = w_t.shape
    assert IN == IN_w, (IN, IN_w)
    out_dtype = prev_hidden.dtype

    if B <= _ROWS_PER_TILE:
        return pl.pallas_call(
            _linear_kernel,
            out_shape=jax.ShapeDtypeStruct((B, OUT), out_dtype),
            in_specs=[
                pl.BlockSpec(memory_space=pltpu.MemorySpace.VMEM),  # x
                pl.BlockSpec(memory_space=pltpu.MemorySpace.VMEM),  # W_t
                pl.BlockSpec(memory_space=pltpu.MemorySpace.VMEM),  # bias
            ],
            out_specs=pl.BlockSpec(memory_space=pltpu.MemorySpace.VMEM),
        )(prev_hidden, w_t, b2d)

    # Batched, weight-resident path.
    TB = _ROWS_PER_TILE
    B_pad = _round_up(B, TB)
    x = prev_hidden
    if B_pad != B:
        # One pad for the whole batch (amortized over B_pad//TB grid steps).
        x = jnp.zeros((B_pad, IN), out_dtype).at[:B].set(prev_hidden)

    out = pl.pallas_call(
        _linear_kernel,
        out_shape=jax.ShapeDtypeStruct((B_pad, OUT), out_dtype),
        grid=(B_pad // TB,),
        in_specs=[
            pl.BlockSpec((TB, IN), lambda i: (i, 0)),    # activations stream
            pl.BlockSpec((IN, OUT), lambda i: (0, 0)),   # W resident in VMEM
            pl.BlockSpec((1, OUT), lambda i: (0, 0)),    # bias resident
        ],
        out_specs=pl.BlockSpec((TB, OUT), lambda i: (i, 0)),
        compiler_params=pltpu.CompilerParams(
            dimension_semantics=("parallel",)),          # v7x: 2 TCs
    )(x, w_t, b2d)
    return out if B_pad == B else out[:B]


if __name__ == "__main__":
    # Small shapes consistent with the module's __init__:
    input_size = 16
    hidden_size = 32
    batch = 2
    in_features = hidden_size + input_size   # 48
    out_features = hidden_size               # 32

    key = jax.random.PRNGKey(0)
    k_x, k_w, k_b, k_xb = jax.random.split(key, 4)

    # Deterministic nn.Linear-style init: U(-1/sqrt(fan_in), 1/sqrt(fan_in))
    bound = 1.0 / math.sqrt(in_features)
    weight = jax.random.uniform(k_w, (out_features, in_features),
                                jnp.float32, -bound, bound)
    bias = jax.random.uniform(k_b, (out_features,), jnp.float32, -bound, bound)
    prev_hidden = jax.random.normal(k_x, (batch, in_features), jnp.float32)

    # 1) Module-sized single step, f32 weights: gridless whole-array kernel.
    w_t, b2d = prepare_params(weight, bias)
    out = jax.block_until_ready(rnn_forward(prev_hidden, w_t, b2d))
    ref = prev_hidden @ weight.T + bias
    assert out.shape == (batch, out_features)
    assert jnp.allclose(out, ref, atol=1e-5, rtol=1e-5)

    # 2) bf16 weights (native MXU dtype on v6e/v7x), f32 accumulation.
    w_t16, b2d16 = prepare_params(weight, bias, param_dtype=jnp.bfloat16)
    out16 = jax.block_until_ready(rnn_forward(prev_hidden, w_t16, b2d16))
    ref16 = (prev_hidden.astype(jnp.bfloat16).astype(jnp.float32)
             @ w_t16.astype(jnp.float32)) + bias
    assert jnp.allclose(out16, ref16, atol=5e-3, rtol=5e-3)

    # 3) Large independent batch: exercises the weight-resident "parallel"
    #    grid path (dense 256-row LHS tiles).
    big_B = 512
    big_x = jax.random.normal(k_xb, (big_B, in_features), jnp.float32)
    out_big = jax.block_until_ready(rnn_forward(big_x, w_t, b2d))
    ref_big = big_x @ weight.T + bias
    assert out_big.shape == (big_B, out_features)
    assert jnp.allclose(out_big, ref_big, atol=1e-5, rtol=1e-5)

    print("KERNEL_OK")
</pallas_src>

<mosaic_0001>
module attributes {stable_mosaic.version = 11 : i64} {
  func.func @_linear_kernel(%arg0: memref<2x48xf32, #tpu.memory_space<vmem>>, %arg1: memref<48x32xf32, #tpu.memory_space<vmem>>, %arg2: memref<1x32xf32, #tpu.memory_space<vmem>>, %arg3: memref<2x32xf32, #tpu.memory_space<vmem>>) attributes {dimension_semantics = [], scalar_prefetch = 0 : i64, scratch_operands = 0 : i64, tpu.core_type = #tpu.core_type<tc>} {
    %c0 = arith.constant 0 : index
    %c0_0 = arith.constant 0 : index
    %0 = vector.load %arg1[%c0, %c0_0] : memref<48x32xf32, #tpu.memory_space<vmem>>, vector<48x32xf32>
    %c0_1 = arith.constant 0 : index
    %c0_2 = arith.constant 0 : index
    %1 = vector.load %arg0[%c0_1, %c0_2] : memref<2x48xf32, #tpu.memory_space<vmem>>, vector<2x48xf32>
    %cst = arith.constant dense<0.000000e+00> : vector<2x32xf32>
    %2 = tpu.matmul %1, %0, %cst {dimension_numbers = #tpu.dot_dimension_numbers<[1], [0], [0], [1], [0, 0, 1, 1], [], []>} : vector<2x48xf32>, vector<48x32xf32>, vector<2x32xf32> -> vector<2x32xf32>
    %c0_3 = arith.constant 0 : index
    %c0_4 = arith.constant 0 : index
    %3 = vector.load %arg2[%c0_3, %c0_4] : memref<1x32xf32, #tpu.memory_space<vmem>>, vector<1x32xf32>
    %4 = vector.broadcast %3 : vector<1x32xf32> to vector<2x32xf32>
    %5 = arith.addf %2, %4 : vector<2x32xf32>
    %c0_5 = arith.constant 0 : index
    %c0_6 = arith.constant 0 : index
    %6 = vector.load %arg3[%c0_5, %c0_6] : memref<2x32xf32, #tpu.memory_space<vmem>>, vector<2x32xf32>
    tpu.vector_store %arg3[%c0_5, %c0_6], %5 {strides = array<i32>} : memref<2x32xf32, #tpu.memory_space<vmem>>, vector<2x32xf32>,
    return
  }
}

</mosaic_0001>

<llo_original>
// kernel: rnn_forward.1
$region0: #{rnn_forward.1}
  #allocation0 [shape = 'u32[]', space=smem, size = 0x4, offset = 0x4, fixed_abs, tag = 'smem constant byte address 0x4 - core index']
  #allocation1 [shape = 'u32[72,128]{1,0:T(1,128)}', space=vmem, size = 0x9000, scoped, tag = 'internal scratch']
  %s0 = inlined_call_operand.vmem [shape: f32[2,48], index: 0, kind: input, shape index: {}]
  %s1 = inlined_call_operand.vmem [shape: f32[48,32], index: 1, kind: input, shape index: {}]
  %s2 = inlined_call_operand.vmem [shape: f32[1,32], index: 2, kind: input, shape index: {}]
  %s3 = inlined_call_operand.hbm [shape: f32[2,32], index: 3, kind: output, shape index: {}]
  %s4 = sld [smem:[#allocation0]]
  $region22: #{rnn_forward.1} parent=0
    _
  %s6 = ssub.s32 1, %s4
  %s7 = scalar_select 0, %s6, %s4
  $region1: #{rnn_forward.1} parent=0
    #allocation2 [shape = 'u8[1024]{0}', space=vmem, size = 0x400, scoped, tag = 'output window, operand 0, single buffered']
    #allocation3 [shape = 's32[1]{0}', space=sflag, size = 0x4, scoped, tag = 'scoped memory for rnn_forward.1']
    %8 = vsyncpa [#allocation3], 0
    // Predicated region
    $region2: #{rnn_forward.1} parent=1 // pred_check
      _
    $region3: #{rnn_forward.1} parent=1 // pred_check_branch
      %10 = sbr.rel (0) target = $region5
    $region4: #{rnn_forward.1} parent=1 // pred_region
      _
    $region5: #{rnn_forward.1} parent=1 // pred_fallthru
      _
    // Predicated region
    $region6: #{rnn_forward.1} parent=1 // pred_check
      _
    $region7: #{rnn_forward.1} parent=1 // pred_check_branch
      %12 = sbr.rel (0) target = $region9
    $region8: #{rnn_forward.1} parent=1 // pred_region
      _
    $region9: #{rnn_forward.1} parent=1 // pred_fallthru
      _
    // Predicated region
    $region10: #{rnn_forward.1} parent=1 // pred_check
      _
    $region11: #{rnn_forward.1} parent=1 // pred_check_branch
      %14 = sbr.rel (0) target = $region13
    $region12: #{rnn_forward.1} parent=1 // pred_region
      _
    $region13: #{rnn_forward.1} parent=1 // pred_fallthru
      _
    %v15 = vld [vmem:[%s1] sm:$0xff]
    %v16 = vld [vmem:[%s1 + $0x8] sm:$0xff]
    %v17 = vld [vmem:[%s1 + $0x10] sm:$0xff]
    %v18 = vld [vmem:[%s1 + $0x18] sm:$0xff]
    %v19 = vld [vmem:[%s1 + $0x20] sm:$0xff]
    %v20 = vld [vmem:[%s1 + $0x28] sm:$0xff]
    %v21 = vld [vmem:[%s0] sm:$0x3]
    %v22 = vld [vmem:[%s2] sm:$0x1]
    %v24 = vperm.slane %v22, 0
    %vm26 = vcmask 392192
    %v28 = vsel %vm26, %v21, 0
    %30 = vmatpush.msra.mxu0 0.0
    %31 = vmatpush.msra.mxu0 0.0
    %32 = vmatpush.msra.mxu0 0.0
    %33 = vmatpush.msra.mxu0 0.0
    %34 = vmatpush.msra.mxu0 0.0
    %35 = vmatpush.msra.mxu0 0.0
    %36 = vmatpush.msra.mxu0 0.0
    %37 = vmatpush.msra.mxu0 0.0
    %38 = vmatpush.msra.mxu0 0.0
    %39 = vmatpush.msra.mxu0 0.0
    %40 = vmatpush.msra.mxu0 %v20
    %41 = vmatpush.msra.mxu0 %v19
    %42 = vmatpush.msra.mxu0 %v18
    %43 = vmatpush.msra.mxu0 %v17
    %44 = vmatpush.msra.mxu0 %v16
    %45 = vmatpush.msra.mxu0 %v15
    %46 = vmatmul.f32.gmra.mxu0 %v28
    %v47 = vpop.f32.mrf.mxu0
    %v48 = vadd.f32 %v24, %v47
    %49 = vdwg.mxu0
    %vm50 = vcmask 254976
    %51 = vst.msk [vmem:[#allocation2] sm:$0x3] %vm50, %v48
    // Predicated region
    $region14: #{rnn_forward.1} parent=1 // pred_check
      _
    $region15: #{rnn_forward.1} parent=1 // pred_check_branch
      %53 = sbr.rel (0) target = $region17
    $region16: #{rnn_forward.1} parent=1 // pred_region
      %55 = vsyncadd [#allocation3], 0
      %s57 = sshll.u32 [#allocation2], 4
      %s58 = int_to_ptr.vmem [resolvable:$true] %s57
      %s59 = sshll.u32 %s3, 4
      %s60 = int_to_ptr.hbm [resolvable:$true] %s59
      %62 = dma.vmem_to_hbm [thread:$0]  %s58, 32, %s60, [#allocation3]
    $region17: #{rnn_forward.1} parent=1 // pred_fallthru
      _
    // Predicated region
    $region18: #{rnn_forward.1} parent=1 // pred_check
      _
    $region19: #{rnn_forward.1} parent=1 // pred_check_branch
      %64 = sbr.rel (0) target = $region21
    $region20: #{rnn_forward.1} parent=1 // pred_region
      %66 = dma.done [#allocation3], 32
    $region21: #{rnn_forward.1} parent=1 // pred_fallthru
      _
    %67 = vsyncpa [#allocation3], 1

</llo_original>
